<compile_context>
chip_gen: v7x
topology: tpu7x:2x2x1
jax: 0.10.0
libtpu: 0.0.40
codegen_flags: <defaults>
</compile_context>

<pallas_src>
import functools

import jax
import jax.numpy as jnp
from jax.experimental import pallas as pl
from jax.experimental.pallas import tpu as pltpu


# ----------------------------- small helpers ---------------------------------

def _apply_act(x, act):
    if act == "tanh":
        return jnp.tanh(x)
    if act == "relu":
        return jnp.maximum(x, 0.0)
    if act in ("none", None):
        return x
    raise ValueError(f"unsupported act: {act}")


def _round_up(x, m):
    return ((x + m - 1) // m) * m


def _cdiv(a, b):
    return (a + b - 1) // b


def _pad2d(x, rows, cols):
    pr, pc = rows - x.shape[0], cols - x.shape[1]
    if pr or pc:
        x = jnp.pad(x, ((0, pr), (0, pc)))
    return x


def _vmem_cap_bytes():
    # Generation-aware VMEM budget: ~75% of physical VMEM, capped at 100 MiB
    # (v5e/v6e: 128 MiB physical -> ~96-100 MiB; v7x: 64 MiB -> 48 MiB).
    try:
        phys = pltpu.get_tpu_info().vmem_capacity_bytes
    except Exception:
        phys = 64 << 20  # conservative (v7x-sized) fallback
    return min(int(phys * 3 // 4), 100 << 20)


def _balanced_tile(total, max_tile, align):
    """Tile size minimizing tail padding (<= one alignment group wasted per tile)."""
    total_al = _round_up(max(total, 1), align)
    if total_al <= max_tile:
        return total_al
    n = _cdiv(total_al, max_tile)
    return _round_up(_cdiv(total_al, n), align)


def _plan(batch, d1p, d2p, dout, tb, tn, in_bytes, out_bytes, n_out):
    """Pick tile sizes, padded extents, grid order and a VMEM limit."""
    cap = _vmem_cap_bytes()

    tb_eff = _balanced_tile(batch, tb, 8)
    tn_eff = _balanced_tile(dout, tn, 128)

    def footprint(tbv, tnv):
        per_in = (tbv * (d1p + d2p) + (d1p + d2p) * tnv + 2 * tnv) * in_bytes
        per_out = n_out * tbv * tnv * out_bytes
        # double-buffered I/O plus f32 intermediates held inside the kernel
        return 2 * (per_in + per_out) + 2 * n_out * tbv * tnv * 4

    # Shrink tiles until the working set fits under the budget (4 MiB headroom).
    while footprint(tb_eff, tn_eff) + (4 << 20) > cap and tn_eff > 128:
        tn_eff = _round_up(max(tn_eff // 2, 128), 128)
    while footprint(tb_eff, tn_eff) + (4 << 20) > cap and tb_eff > 8:
        tb_eff = _round_up(max(tb_eff // 2, 8), 8)

    Bp = _round_up(batch, tb_eff)
    Dp = _round_up(dout, tn_eff)

    # Megacore: keep >= 2 tiles along a parallel axis when the feature dim allows it.
    if Bp // tb_eff == 1 and Dp // tn_eff == 1 and Dp >= 256:
        tn_eff = _round_up(_cdiv(Dp, 2), 128)
        Dp = _round_up(dout, tn_eff)

    nb, nd = Bp // tb_eff, Dp // tn_eff

    # Grid order: the operand whose block index changes on the inner axis gets
    # re-streamed from HBM; make that the smaller one.
    act_bytes = Bp * (d1p + d2p) * in_bytes
    w_bytes = (d1p + d2p) * Dp * in_bytes
    batch_outer_traffic = w_bytes * nb + act_bytes   # weights re-streamed nb times
    feat_outer_traffic = act_bytes * nd + w_bytes    # activations re-streamed nd times
    feature_outer = feat_outer_traffic < batch_outer_traffic

    vmem = max(16 << 20, min(2 * footprint(tb_eff, tn_eff) + (2 << 20), cap))
    return tb_eff, tn_eff, Bp, Dp, nb, nd, feature_outer, int(vmem)


def _specs(tb, d1, d2, tn, feature_outer):
    if feature_outer:            # grid = (nd, nb): feature axis outer / slow
        ab_map = lambda j, i: (i, 0)
        w_map = lambda j, i: (0, j)
        o_map = lambda j, i: (i, j)
    else:                        # grid = (nb, nd): batch axis outer / slow
        ab_map = lambda i, j: (i, 0)
        w_map = lambda i, j: (0, j)
        o_map = lambda i, j: (i, j)
    a_spec = pl.BlockSpec((tb, d1), ab_map)
    b_spec = pl.BlockSpec((tb, d2), ab_map)
    wa_spec = pl.BlockSpec((d1, tn), w_map)
    wb_spec = pl.BlockSpec((d2, tn), w_map)
    bias_spec = pl.BlockSpec((1, tn), w_map)
    o_spec = pl.BlockSpec((tb, tn), o_map)
    return a_spec, b_spec, wa_spec, wb_spec, bias_spec, o_spec


# --------------------------------- kernels ------------------------------------
# Inputs arrive already in the MXU dtype (cast once at the HBM boundary by the
# wrapper); accumulation and the elementwise epilogue stay in f32.

def _add_joint_kernel(a_ref, b_ref, wa_ref, ba_ref, wb_ref, bb_ref, o_ref, *, act):
    ya = jnp.dot(a_ref[...], wa_ref[...], preferred_element_type=jnp.float32) + ba_ref[...]
    yb = jnp.dot(b_ref[...], wb_ref[...], preferred_element_type=jnp.float32) + bb_ref[...]
    o_ref[...] = ((_apply_act(ya, act) + _apply_act(yb, act)) * 0.5).astype(o_ref.dtype)


def _cat_joint_kernel(a_ref, b_ref, wt_ref, wb_ref, bias_ref, o_ref, *, act, scale):
    # concat([A, B], -1) @ W  ==  A @ W_top + B @ W_bot   (W split along rows)
    y = jnp.dot(a_ref[...], wt_ref[...], preferred_element_type=jnp.float32)
    y = y + jnp.dot(b_ref[...], wb_ref[...], preferred_element_type=jnp.float32)
    y = y + bias_ref[...]
    if scale != 1.0:
        y = y * scale
    o_ref[...] = _apply_act(y, act).astype(o_ref.dtype)


def _none_joint_kernel(a_ref, b_ref, wa_ref, ba_ref, wb_ref, bb_ref,
                       oa_ref, ob_ref, *, act):
    ya = jnp.dot(a_ref[...], wa_ref[...], preferred_element_type=jnp.float32) + ba_ref[...]
    yb = jnp.dot(b_ref[...], wb_ref[...], preferred_element_type=jnp.float32) + bb_ref[...]
    oa_ref[...] = _apply_act(ya, act).astype(oa_ref.dtype)
    ob_ref[...] = _apply_act(yb, act).astype(ob_ref.dtype)


# -------------------------------- wrappers -------------------------------------

def _two_branch_call(kernel_fn, a, b, wa, ba, wb, bb, *, act, tb, tn,
                     mxu_dtype, out_dtype, n_out):
    B, d1 = a.shape
    _, d2 = b.shape
    dout = wa.shape[1]

    in_dtype = mxu_dtype if mxu_dtype is not None else a.dtype
    out_dtype = out_dtype if out_dtype is not None else a.dtype
    in_bytes = jnp.dtype(in_dtype).itemsize
    out_bytes = jnp.dtype(out_dtype).itemsize

    # K (contraction) dims padded to MXU-friendly multiples of 128 (zeros are free).
    d1p, d2p = _round_up(d1, 128), _round_up(d2, 128)

    tb_eff, tn_eff, Bp, Dp, nb, nd, feat_outer, vmem = _plan(
        B, d1p, d2p, dout, tb, tn, in_bytes, out_bytes, n_out)

    # Cast once at the HBM boundary (halves DMA bytes / VMEM tiles for bf16).
    a_p = _pad2d(a, Bp, d1p).astype(in_dtype)
    b_p = _pad2d(b, Bp, d2p).astype(in_dtype)
    wa_p = _pad2d(wa, d1p, Dp).astype(in_dtype)
    wb_p = _pad2d(wb, d2p, Dp).astype(in_dtype)
    ba_p = _pad2d(ba, 1, Dp).astype(jnp.float32)   # biases stay f32 (post-accumulate add)
    bb_p = _pad2d(bb, 1, Dp).astype(jnp.float32)

    a_s, b_s, wa_s, wb_s, bias_s, o_s = _specs(tb_eff, d1p, d2p, tn_eff, feat_outer)
    grid = (nd, nb) if feat_outer else (nb, nd)

    one = jax.ShapeDtypeStruct((Bp, Dp), out_dtype)
    out_shape = (one, one) if n_out == 2 else one
    out_specs = (o_s, o_s) if n_out == 2 else o_s

    cost = pl.CostEstimate(
        flops=2 * Bp * (d1p + d2p) * Dp,
        transcendentals=(2 if act == "tanh" else 0) * Bp * Dp,
        bytes_accessed=(Bp * (d1p + d2p) + (d1p + d2p) * Dp + 2 * Dp) * in_bytes
        + n_out * Bp * Dp * out_bytes,
    )

    out = pl.pallas_call(
        functools.partial(kernel_fn, act=act),
        out_shape=out_shape,
        grid=grid,
        in_specs=[a_s, b_s, wa_s, bias_s, wb_s, bias_s],
        out_specs=out_specs,
        compiler_params=pltpu.CompilerParams(
            dimension_semantics=("parallel", "parallel"),
            vmem_limit_bytes=vmem),
        cost_estimate=cost,
    )(a_p, b_p, wa_p, ba_p, wb_p, bb_p)

    if n_out == 2:
        return out[0][:B, :dout], out[1][:B, :dout]
    return out[:B, :dout]


def _cat_call(a, b, w_top, w_bot, bias, *, act, scale, tb, tn, mxu_dtype, out_dtype):
    B, d1 = a.shape
    _, d2 = b.shape
    dout = w_top.shape[1]

    in_dtype = mxu_dtype if mxu_dtype is not None else a.dtype
    out_dtype = out_dtype if out_dtype is not None else a.dtype
    in_bytes = jnp.dtype(in_dtype).itemsize
    out_bytes = jnp.dtype(out_dtype).itemsize

    d1p, d2p = _round_up(d1, 128), _round_up(d2, 128)

    tb_eff, tn_eff, Bp, Dp, nb, nd, feat_outer, vmem = _plan(
        B, d1p, d2p, dout, tb, tn, in_bytes, out_bytes, 1)

    a_p = _pad2d(a, Bp, d1p).astype(in_dtype)
    b_p = _pad2d(b, Bp, d2p).astype(in_dtype)
    wt_p = _pad2d(w_top, d1p, Dp).astype(in_dtype)
    wb_p = _pad2d(w_bot, d2p, Dp).astype(in_dtype)
    bias_p = _pad2d(bias, 1, Dp).astype(jnp.float32)

    a_s, b_s, wa_s, wb_s, bias_s, o_s = _specs(tb_eff, d1p, d2p, tn_eff, feat_outer)
    grid = (nd, nb) if feat_outer else (nb, nd)

    cost = pl.CostEstimate(
        flops=2 * Bp * (d1p + d2p) * Dp,
        transcendentals=(1 if act == "tanh" else 0) * Bp * Dp,
        bytes_accessed=(Bp * (d1p + d2p) + (d1p + d2p) * Dp + Dp) * in_bytes
        + Bp * Dp * out_bytes,
    )

    out = pl.pallas_call(
        functools.partial(_cat_joint_kernel, act=act, scale=scale),
        out_shape=jax.ShapeDtypeStruct((Bp, Dp), out_dtype),
        grid=grid,
        in_specs=[a_s, b_s, wa_s, wb_s, bias_s],
        out_specs=o_s,
        compiler_params=pltpu.CompilerParams(
            dimension_semantics=("parallel", "parallel"),
            vmem_limit_bytes=vmem),
        cost_estimate=cost,
    )(a_p, b_p, wt_p, wb_p, bias_p)

    return out[:B, :dout]


def add_joint(a, b, wa, ba, wb, bb, *, act="tanh", tb=256, tn=512,
              mxu_dtype=None, out_dtype=None):
    if act in ("none", None):
        # Identity activation: single-pass cat-style kernel; the 0.5 average is a
        # free VPU multiply in the epilogue (no wrapper-side weight rescale).
        return _cat_call(a, b, wa, wb, ba + bb, act="none", scale=0.5,
                         tb=tb, tn=tn, mxu_dtype=mxu_dtype, out_dtype=out_dtype)
    return _two_branch_call(_add_joint_kernel, a, b, wa, ba, wb, bb,
                            act=act, tb=tb, tn=tn, mxu_dtype=mxu_dtype,
                            out_dtype=out_dtype, n_out=1)


def cat_joint(a, b, w, bias, *, act="tanh", tb=256, tn=512,
              mxu_dtype=None, out_dtype=None):
    d1 = a.shape[1]
    return _cat_call(a, b, w[:d1, :], w[d1:, :], bias, act=act, scale=1.0,
                     tb=tb, tn=tn, mxu_dtype=mxu_dtype, out_dtype=out_dtype)


def none_joint(a, b, wa, ba, wb, bb, *, act="tanh", tb=256, tn=512,
               mxu_dtype=None, out_dtype=None):
    return _two_branch_call(_none_joint_kernel, a, b, wa, ba, wb, bb,
                            act=act, tb=tb, tn=tn, mxu_dtype=mxu_dtype,
                            out_dtype=out_dtype, n_out=2)


# ------------------------------ pure-JAX reference ------------------------------

def _linear_ref(x, w, b, act):
    return _apply_act(x @ w + b, act)


def add_joint_ref(a, b, wa, ba, wb, bb, act="tanh"):
    return (_linear_ref(a, wa, ba, act) + _linear_ref(b, wb, bb, act)) / 2.0


def cat_joint_ref(a, b, w, bias, act="tanh"):
    return _linear_ref(jnp.concatenate([a, b], axis=-1), w, bias, act)


def none_joint_ref(a, b, wa, ba, wb, bb, act="tanh"):
    return _linear_ref(a, wa, ba, act), _linear_ref(b, wb, bb, act)


# ----------------------------------- main ---------------------------------------

if __name__ == "__main__":
    key = jax.random.PRNGKey(0)
    B, D1, D2, DOUT = 16, 32, 48, 64
    ACT = "tanh"

    ks = jax.random.split(key, 8)
    a = jax.random.normal(ks[0], (B, D1), jnp.float32)
    b = jax.random.normal(ks[1], (B, D2), jnp.float32)

    # Deterministic synthetic "parameters" (not loaded from a checkpoint).
    wa = jax.random.normal(ks[2], (D1, DOUT), jnp.float32) * 0.1
    ba = jax.random.normal(ks[3], (1, DOUT), jnp.float32) * 0.1
    wb = jax.random.normal(ks[4], (D2, DOUT), jnp.float32) * 0.1
    bb = jax.random.normal(ks[5], (1, DOUT), jnp.float32) * 0.1
    w_cat = jax.random.normal(ks[6], (D1 + D2, DOUT), jnp.float32) * 0.1
    b_cat = jax.random.normal(ks[7], (1, DOUT), jnp.float32) * 0.1

    # 'add' joint
    out_add = jax.block_until_ready(add_joint(a, b, wa, ba, wb, bb, act=ACT))
    ref_add = add_joint_ref(a, b, wa, ba, wb, bb, ACT)
    assert jnp.allclose(out_add, ref_add, atol=1e-5, rtol=1e-5)

    # 'cat' joint
    out_cat = jax.block_until_ready(cat_joint(a, b, w_cat, b_cat, act=ACT))
    ref_cat = cat_joint_ref(a, b, w_cat, b_cat, ACT)
    assert jnp.allclose(out_cat, ref_cat, atol=1e-5, rtol=1e-5)

    # 'none' joint
    out_na, out_nb = jax.block_until_ready(none_joint(a, b, wa, ba, wb, bb, act=ACT))
    ref_na, ref_nb = none_joint_ref(a, b, wa, ba, wb, bb, ACT)
    assert jnp.allclose(out_na, ref_na, atol=1e-5, rtol=1e-5)
    assert jnp.allclose(out_nb, ref_nb, atol=1e-5, rtol=1e-5)

    # Ragged batch (B not a multiple of the tile) — exercises pad/slice tail handling.
    a13, b13 = a[:13], b[:13]
    out_r = jax.block_until_ready(add_joint(a13, b13, wa, ba, wb, bb, act=ACT))
    assert jnp.allclose(out_r, add_joint_ref(a13, b13, wa, ba, wb, bb, ACT),
                        atol=1e-5, rtol=1e-5)

    # 'add' with identity activation — fused single-pass path with in-kernel *0.5.
    out_id = jax.block_until_ready(add_joint(a, b, wa, ba, wb, bb, act="none"))
    assert jnp.allclose(out_id, add_joint_ref(a, b, wa, ba, wb, bb, "none"),
                        atol=1e-5, rtol=1e-5)

    # bf16 MXU-input path (cast at HBM boundary, f32 accumulate) — looser tolerance.
    out_bf = jax.block_until_ready(
        add_joint(a, b, wa, ba, wb, bb, act=ACT, mxu_dtype=jnp.bfloat16))
    assert jnp.allclose(out_bf, ref_add, atol=5e-2, rtol=5e-2)

    # bf16 output path (halves writeback bytes).
    out_bo = jax.block_until_ready(
        add_joint(a, b, wa, ba, wb, bb, act=ACT, out_dtype=jnp.bfloat16))
    assert jnp.allclose(out_bo.astype(jnp.float32), ref_add, atol=2e-2, rtol=2e-2)

    print("KERNEL_OK")
</pallas_src>

<mosaic_0001>
module attributes {stable_mosaic.version = 11 : i64} {
  func.func @_add_joint_kernel(%arg0: i32, %arg1: i32, %arg2: memref<16x128xf32, #tpu.memory_space<vmem>>, %arg3: memref<16x128xf32, #tpu.memory_space<vmem>>, %arg4: memref<128x128xf32, #tpu.memory_space<vmem>>, %arg5: memref<1x128xf32, #tpu.memory_space<vmem>>, %arg6: memref<128x128xf32, #tpu.memory_space<vmem>>, %arg7: memref<1x128xf32, #tpu.memory_space<vmem>>, %arg8: memref<16x128xf32, #tpu.memory_space<vmem>>) attributes {dimension_semantics = [#tpu.dimension_semantics<parallel>, #tpu.dimension_semantics<parallel>], iteration_bounds = array<i64: 1, 1>, scalar_prefetch = 0 : i64, scratch_operands = 0 : i64, tpu.core_type = #tpu.core_type<tc>, window_params = [{transform_indices = @transform_0, window_bounds = array<i64: 16, 128>}, {transform_indices = @transform_1, window_bounds = array<i64: 16, 128>}, {transform_indices = @transform_2, window_bounds = array<i64: 128, 128>}, {transform_indices = @transform_3, window_bounds = array<i64: 1, 128>}, {transform_indices = @transform_4, window_bounds = array<i64: 128, 128>}, {transform_indices = @transform_5, window_bounds = array<i64: 1, 128>}, {transform_indices = @transform_6, window_bounds = array<i64: 16, 128>}]} {
    %c0 = arith.constant 0 : index
    %c0_0 = arith.constant 0 : index
    %0 = vector.load %arg2[%c0, %c0_0] : memref<16x128xf32, #tpu.memory_space<vmem>>, vector<16x128xf32>
    %c0_1 = arith.constant 0 : index
    %c0_2 = arith.constant 0 : index
    %1 = vector.load %arg4[%c0_1, %c0_2] : memref<128x128xf32, #tpu.memory_space<vmem>>, vector<128x128xf32>
    %cst = arith.constant dense<0.000000e+00> : vector<16x128xf32>
    %2 = tpu.matmul %0, %1, %cst {dimension_numbers = #tpu.dot_dimension_numbers<[1], [0], [0], [1], [0, 0, 1, 1], [], []>} : vector<16x128xf32>, vector<128x128xf32>, vector<16x128xf32> -> vector<16x128xf32>
    %c0_3 = arith.constant 0 : index
    %c0_4 = arith.constant 0 : index
    %3 = vector.load %arg5[%c0_3, %c0_4] : memref<1x128xf32, #tpu.memory_space<vmem>>, vector<1x128xf32>
    %4 = vector.broadcast %3 : vector<1x128xf32> to vector<16x128xf32>
    %5 = arith.addf %2, %4 : vector<16x128xf32>
    %c0_5 = arith.constant 0 : index
    %c0_6 = arith.constant 0 : index
    %6 = vector.load %arg3[%c0_5, %c0_6] : memref<16x128xf32, #tpu.memory_space<vmem>>, vector<16x128xf32>
    %c0_7 = arith.constant 0 : index
    %c0_8 = arith.constant 0 : index
    %7 = vector.load %arg6[%c0_7, %c0_8] : memref<128x128xf32, #tpu.memory_space<vmem>>, vector<128x128xf32>
    %cst_9 = arith.constant dense<0.000000e+00> : vector<16x128xf32>
    %8 = tpu.matmul %6, %7, %cst_9 {dimension_numbers = #tpu.dot_dimension_numbers<[1], [0], [0], [1], [0, 0, 1, 1], [], []>} : vector<16x128xf32>, vector<128x128xf32>, vector<16x128xf32> -> vector<16x128xf32>
    %c0_10 = arith.constant 0 : index
    %c0_11 = arith.constant 0 : index
    %9 = vector.load %arg7[%c0_10, %c0_11] : memref<1x128xf32, #tpu.memory_space<vmem>>, vector<1x128xf32>
    %10 = vector.broadcast %9 : vector<1x128xf32> to vector<16x128xf32>
    %11 = arith.addf %8, %10 : vector<16x128xf32>
    %12 = math.tanh %5 : vector<16x128xf32>
    %13 = math.tanh %11 : vector<16x128xf32>
    %14 = arith.addf %12, %13 : vector<16x128xf32>
    %cst_12 = arith.constant 5.000000e-01 : f32
    %15 = vector.broadcast %cst_12 : f32 to vector<16x128xf32>
    %16 = arith.mulf %14, %15 : vector<16x128xf32>
    %c0_13 = arith.constant 0 : index
    %c0_14 = arith.constant 0 : index
    %17 = vector.load %arg8[%c0_13, %c0_14] : memref<16x128xf32, #tpu.memory_space<vmem>>, vector<16x128xf32>
    tpu.vector_store %arg8[%c0_13, %c0_14], %16 {strides = array<i32>} : memref<16x128xf32, #tpu.memory_space<vmem>>, vector<16x128xf32>,
    return
  }
  func.func @transform_0(%arg0: i32, %arg1: i32) -> (i32, i32) {
    %c0_i32 = arith.constant 0 : i32
    %c0_i32_0 = arith.constant 0 : i32
    return %arg0, %c0_i32 : i32, i32
  }
  func.func @transform_1(%arg0: i32, %arg1: i32) -> (i32, i32) {
    %c0_i32 = arith.constant 0 : i32
    %c0_i32_0 = arith.constant 0 : i32
    return %arg0, %c0_i32 : i32, i32
  }
  func.func @transform_2(%arg0: i32, %arg1: i32) -> (i32, i32) {
    %c0_i32 = arith.constant 0 : i32
    %c0_i32_0 = arith.constant 0 : i32
    return %c0_i32, %arg1 : i32, i32
  }
  func.func @transform_3(%arg0: i32, %arg1: i32) -> (i32, i32) {
    %c0_i32 = arith.constant 0 : i32
    %c0_i32_0 = arith.constant 0 : i32
    return %c0_i32, %arg1 : i32, i32
  }
  func.func @transform_4(%arg0: i32, %arg1: i32) -> (i32, i32) {
    %c0_i32 = arith.constant 0 : i32
    %c0_i32_0 = arith.constant 0 : i32
    return %c0_i32, %arg1 : i32, i32
  }
  func.func @transform_5(%arg0: i32, %arg1: i32) -> (i32, i32) {
    %c0_i32 = arith.constant 0 : i32
    %c0_i32_0 = arith.constant 0 : i32
    return %c0_i32, %arg1 : i32, i32
  }
  func.func @transform_6(%arg0: i32, %arg1: i32) -> (i32, i32) {
    %c0_i32 = arith.constant 0 : i32
    return %arg0, %arg1 : i32, i32
  }
}

</mosaic_0001>

<llo_original>
// kernel: tpu_custom_call.1
$region0: #{tpu_custom_call.1}
  #allocation0 [shape = 'u32[]', space=smem, size = 0x4, offset = 0x4, fixed_abs, tag = 'smem constant byte address 0x4 - core index']
  #allocation1 [shape = 'u32[144,128]{1,0:T(1,128)}', space=vmem, size = 0x12000, scoped, tag = 'internal scratch']
  %s0 = inlined_call_operand.hbm [shape: f32[16,128], index: 0, kind: input, shape index: {}]
  %s1 = inlined_call_operand.hbm [shape: f32[16,128], index: 1, kind: input, shape index: {}]
  %s2 = inlined_call_operand.hbm [shape: f32[128,128], index: 2, kind: input, shape index: {}]
  %s3 = inlined_call_operand.vmem [shape: f32[1,128], index: 3, kind: input, shape index: {}]
  %s4 = inlined_call_operand.hbm [shape: f32[128,128], index: 4, kind: input, shape index: {}]
  %s5 = inlined_call_operand.vmem [shape: f32[1,128], index: 5, kind: input, shape index: {}]
  %s6 = inlined_call_operand.hbm [shape: f32[16,128], index: 6, kind: output, shape index: {}]
  %s7 = sld [smem:[#allocation0]]
  $region50: #{tpu_custom_call.1} parent=0
    _
  %s9 = ssub.s32 1, %s7
  %s10 = scalar_select 0, %s9, %s7
  $region1: #{tpu_custom_call.1} parent=0
    #allocation2 [shape = 'u8[8192]{0}', space=vmem, size = 0x2000, scoped, tag = 'input window, operand 0, single buffered']
    #allocation3 [shape = 's32[1]{0}', space=sflag, size = 0x4, scoped, tag = 'scoped memory for tpu_custom_call.1']
    #allocation4 [shape = 's32[1]{0}', space=sflag, size = 0x4, scoped, tag = 'scoped memory for tpu_custom_call.1']
    #allocation5 [shape = 'u8[8192]{0}', space=vmem, size = 0x2000, scoped, tag = 'input window, operand 1, single buffered']
    #allocation6 [shape = 's32[1]{0}', space=sflag, size = 0x4, scoped, tag = 'scoped memory for tpu_custom_call.1']
    #allocation7 [shape = 'u8[65536]{0}', space=vmem, size = 0x10000, scoped, tag = 'input window, operand 2, single buffered']
    #allocation8 [shape = 'u8[65536]{0}', space=vmem, size = 0x10000, scoped, tag = 'input window, operand 4, single buffered']
    #allocation9 [shape = 's32[1]{0}', space=sflag, size = 0x4, scoped, tag = 'scoped memory for tpu_custom_call.1']
    #allocation10 [shape = 'u8[8192]{0}', space=vmem, size = 0x2000, scoped, tag = 'output window, operand 0, single buffered']
    %11 = vsyncpa [#allocation3], 0
    %12 = vsyncpa [#allocation6], 0
    %13 = vsyncpa [#allocation9], 0
    %14 = vsyncpa [#allocation4], 0
    // Predicated region
    $region2: #{tpu_custom_call.1} parent=1 // pred_check
      _
    $region3: #{tpu_custom_call.1} parent=1 // pred_check_branch
      %16 = sbr.rel (0) target = $region5
    $region4: #{tpu_custom_call.1} parent=1 // pred_region
      %s18 = ssub.s32 256, 256
      %19 = vsyncadd [#allocation3], %s18
      %s20 = sshll.u32 [#allocation2], 4
      %s21 = int_to_ptr.vmem [resolvable:$true] %s20
      %26 = dma.hbm_to_vmem [thread:$0]  %s0, 256, %s21, [#allocation3], 128, 128, 8
    $region5: #{tpu_custom_call.1} parent=1 // pred_fallthru
      _
    // Predicated region
    $region6: #{tpu_custom_call.1} parent=1 // pred_check
      _
    $region7: #{tpu_custom_call.1} parent=1 // pred_check_branch
      %28 = sbr.rel (0) target = $region9
    $region8: #{tpu_custom_call.1} parent=1 // pred_region
      %s30 = ssub.s32 256, 256
      %31 = vsyncadd [#allocation6], %s30
      %s32 = sshll.u32 [#allocation5], 4
      %s33 = int_to_ptr.vmem [resolvable:$true] %s32
      %38 = dma.hbm_to_vmem [thread:$0]  %s1, 256, %s33, [#allocation6], 128, 128, 8
    $region9: #{tpu_custom_call.1} parent=1 // pred_fallthru
      _
    // Predicated region
    $region10: #{tpu_custom_call.1} parent=1 // pred_check
      _
    $region11: #{tpu_custom_call.1} parent=1 // pred_check_branch
      %40 = sbr.rel (0) target = $region13
    $region12: #{tpu_custom_call.1} parent=1 // pred_region
      %s42 = ssub.s32 2048, 2048
      %43 = vsyncadd [#allocation6], %s42
      %s44 = sshll.u32 [#allocation7], 4
      %s45 = int_to_ptr.vmem [resolvable:$true] %s44
      %50 = dma.hbm_to_vmem [thread:$0]  %s2, 2048, %s45, [#allocation6], 128, 128, 8
    $region13: #{tpu_custom_call.1} parent=1 // pred_fallthru
      _
    // Predicated region
    $region14: #{tpu_custom_call.1} parent=1 // pred_check
      _
    $region15: #{tpu_custom_call.1} parent=1 // pred_check_branch
      %52 = sbr.rel (0) target = $region17
    $region16: #{tpu_custom_call.1} parent=1 // pred_region
      _
    $region17: #{tpu_custom_call.1} parent=1 // pred_fallthru
      _
    // Predicated region
    $region18: #{tpu_custom_call.1} parent=1 // pred_check
      _
    $region19: #{tpu_custom_call.1} parent=1 // pred_check_branch
      %54 = sbr.rel (0) target = $region21
    $region20: #{tpu_custom_call.1} parent=1 // pred_region
      %s56 = ssub.s32 2048, 2048
      %57 = vsyncadd [#allocation9], %s56
      %s58 = sshll.u32 [#allocation8], 4
      %s59 = int_to_ptr.vmem [resolvable:$true] %s58
      %64 = dma.hbm_to_vmem [thread:$0]  %s4, 2048, %s59, [#allocation9], 128, 128, 8
    $region21: #{tpu_custom_call.1} parent=1 // pred_fallthru
      _
    // Predicated region
    $region22: #{tpu_custom_call.1} parent=1 // pred_check
      _
    $region23: #{tpu_custom_call.1} parent=1 // pred_check_branch
      %66 = sbr.rel (0) target = $region25
    $region24: #{tpu_custom_call.1} parent=1 // pred_region
      _
    $region25: #{tpu_custom_call.1} parent=1 // pred_fallthru
      _
    // Predicated region
    $region26: #{tpu_custom_call.1} parent=1 // pred_check
      _
    $region27: #{tpu_custom_call.1} parent=1 // pred_check_branch
      %68 = sbr.rel (0) target = $region29
    $region28: #{tpu_custom_call.1} parent=1 // pred_region
      %69 = dma.done [#allocation3], 256
    $region29: #{tpu_custom_call.1} parent=1 // pred_fallthru
      _
    // Predicated region
    $region30: #{tpu_custom_call.1} parent=1 // pred_check
      _
    $region31: #{tpu_custom_call.1} parent=1 // pred_check_branch
      %71 = sbr.rel (0) target = $region33
    $region32: #{tpu_custom_call.1} parent=1 // pred_region
      %72 = dma.done [#allocation6], 256
    $region33: #{tpu_custom_call.1} parent=1 // pred_fallthru
      _
    // Predicated region
    $region34: #{tpu_custom_call.1} parent=1 // pred_check
      _
    $region35: #{tpu_custom_call.1} parent=1 // pred_check_branch
      %74 = sbr.rel (0) target = $region37
    $region36: #{tpu_custom_call.1} parent=1 // pred_region
      %75 = dma.done [#allocation6], 2048
    $region37: #{tpu_custom_call.1} parent=1 // pred_fallthru
      _
    // Predicated region
    $region38: #{tpu_custom_call.1} parent=1 // pred_check
      _
    $region39: #{tpu_custom_call.1} parent=1 // pred_check_branch
      %77 = sbr.rel (0) target = $region41
    $region40: #{tpu_custom_call.1} parent=1 // pred_region
      %78 = dma.done [#allocation9], 2048
    $region41: #{tpu_custom_call.1} parent=1 // pred_fallthru
      _
    %v79 = vld [vmem:[#allocation2] sm:$0xff]
    %v80 = vld [vmem:[#allocation2 + $0x8] sm:$0xff]
    %v81 = vld [vmem:[#allocation7] sm:$0xff]
    %v82 = vld [vmem:[#allocation7 + $0x8] sm:$0xff]
    %v83 = vld [vmem:[#allocation7 + $0x10] sm:$0xff]
    %v84 = vld [vmem:[#allocation7 + $0x18] sm:$0xff]
    %v85 = vld [vmem:[#allocation7 + $0x20] sm:$0xff]
    %v86 = vld [vmem:[#allocation7 + $0x28] sm:$0xff]
    %v87 = vld [vmem:[#allocation7 + $0x30] sm:$0xff]
    %v88 = vld [vmem:[#allocation7 + $0x38] sm:$0xff]
    %v89 = vld [vmem:[#allocation7 + $0x40] sm:$0xff]
    %v90 = vld [vmem:[#allocation7 + $0x48] sm:$0xff]
    %v91 = vld [vmem:[#allocation7 + $0x50] sm:$0xff]
    %v92 = vld [vmem:[#allocation7 + $0x58] sm:$0xff]
    %v93 = vld [vmem:[#allocation7 + $0x60] sm:$0xff]
    %v94 = vld [vmem:[#allocation7 + $0x68] sm:$0xff]
    %v95 = vld [vmem:[#allocation7 + $0x70] sm:$0xff]
    %v96 = vld [vmem:[#allocation7 + $0x78] sm:$0xff]
    %v97 = vld [vmem:[%s3] sm:$0x1]
    %v99 = vlaneseq
    %v100 = vshrl.u32 %v99, 7
    %v101 = vsub.s32 0, %v100
    %v102 = vrot.slane %v97, %v101
    %104 = vmatprep.subr.mxu0 0.0
    %105 = vmatpush1.msra.mxu0 %v81
    %106 = vmatprep.subr.mxu0 0.0
    %107 = vmatpush1.msra.mxu0 %v82
    %108 = vmatprep.subr.mxu0 0.0
    %109 = vmatpush1.msra.mxu0 %v83
    %110 = vmatprep.subr.mxu0 0.0
    %111 = vmatpush1.msra.mxu0 %v84
    %112 = vmatprep.subr.mxu0 0.0
    %113 = vmatpush1.msra.mxu0 %v85
    %114 = vmatprep.subr.mxu0 0.0
    %115 = vmatpush1.msra.mxu0 %v86
    %116 = vmatprep.subr.mxu0 0.0
    %117 = vmatpush1.msra.mxu0 %v87
    %118 = vmatprep.subr.mxu0 0.0
    %119 = vmatpush1.msra.mxu0 %v88
    %120 = vmatprep.subr.mxu0 0.0
    %121 = vmatpush1.msra.mxu0 %v89
    %122 = vmatprep.subr.mxu0 0.0
    %123 = vmatpush1.msra.mxu0 %v90
    %124 = vmatprep.subr.mxu0 0.0
    %125 = vmatpush1.msra.mxu0 %v91
    %126 = vmatprep.subr.mxu0 0.0
    %127 = vmatpush1.msra.mxu0 %v92
    %128 = vmatprep.subr.mxu0 0.0
    %129 = vmatpush1.msra.mxu0 %v93
    %130 = vmatprep.subr.mxu0 0.0
    %131 = vmatpush1.msra.mxu0 %v94
    %132 = vmatprep.subr.mxu0 0.0
    %133 = vmatpush1.msra.mxu0 %v95
    %134 = vmatprep.subr.mxu0 0.0
    %135 = vmatpush1.msra.mxu0 %v96
    %136 = vmatprep.subr.mxu0 0.0
    %137 = vmatpush1.msra.mxu0 0.0
    %138 = vmatprep.subr.mxu0 0.0
    %139 = vmatpush1.msra.mxu0 0.0
    %140 = vmatprep.subr.mxu0 0.0
    %141 = vmatpush1.msra.mxu0 0.0
    %142 = vmatprep.subr.mxu0 0.0
    %143 = vmatpush1.msra.mxu0 0.0
    %144 = vmatprep.subr.mxu0 0.0
    %145 = vmatpush1.msra.mxu0 0.0
    %146 = vmatprep.subr.mxu0 0.0
    %147 = vmatpush1.msra.mxu0 0.0
    %148 = vmatprep.subr.mxu0 0.0
    %149 = vmatpush1.msra.mxu0 0.0
    %150 = vmatprep.subr.mxu0 0.0
    %151 = vmatpush1.msra.mxu0 0.0
    %152 = vmatprep.subr.mxu0 0.0
    %153 = vmatpush1.msra.mxu0 0.0
    %154 = vmatprep.subr.mxu0 0.0
    %155 = vmatpush1.msra.mxu0 0.0
    %156 = vmatprep.subr.mxu0 0.0
    %157 = vmatpush1.msra.mxu0 0.0
    %158 = vmatprep.subr.mxu0 0.0
    %159 = vmatpush1.msra.mxu0 0.0
    %160 = vmatprep.subr.mxu0 0.0
    %161 = vmatpush1.msra.mxu0 0.0
    %162 = vmatprep.subr.mxu0 0.0
    %163 = vmatpush1.msra.mxu0 0.0
    %164 = vmatprep.subr.mxu0 0.0
    %165 = vmatpush1.msra.mxu0 0.0
    %166 = vmatprep.subr.mxu0 0.0
    %167 = vmatpush1.msra.mxu0 0.0
    %168 = vmatprep.mubr.f32.mxu0 0.0
    %169 = vmatmul.mubr.f32.gmra.mrb[0].mxu0 %v79
    %v170 = vpop.f32.mrb[0].mxu0
    %v171 = vadd.f32 %v102, %v170
    %v172 = vpop.f32.mrb[0].mxu0
    %173 = vmatprep.mubr.f32.mxu0 0.0
    %174 = vmatmul.mubr.f32.gmra.mrb[0].mxu0 %v80
    %v175 = vpop.f32.mrb[0].mxu0
    %v176 = vadd.f32 %v102, %v175
    %v177 = vpop.f32.mrb[0].mxu0
    %178 = vdwg.mxu0
    %v179 = vld [vmem:[#allocation5] sm:$0xff]
    %v180 = vld [vmem:[#allocation5 + $0x8] sm:$0xff]
    %v181 = vld [vmem:[#allocation8] sm:$0xff]
    %v182 = vld [vmem:[#allocation8 + $0x8] sm:$0xff]
    %v183 = vld [vmem:[#allocation8 + $0x10] sm:$0xff]
    %v184 = vld [vmem:[#allocation8 + $0x18] sm:$0xff]
    %v185 = vld [vmem:[#allocation8 + $0x20] sm:$0xff]
    %v186 = vld [vmem:[#allocation8 + $0x28] sm:$0xff]
    %v187 = vld [vmem:[#allocation8 + $0x30] sm:$0xff]
    %v188 = vld [vmem:[#allocation8 + $0x38] sm:$0xff]
    %v189 = vld [vmem:[#allocation8 + $0x40] sm:$0xff]
    %v190 = vld [vmem:[#allocation8 + $0x48] sm:$0xff]
    %v191 = vld [vmem:[#allocation8 + $0x50] sm:$0xff]
    %v192 = vld [vmem:[#allocation8 + $0x58] sm:$0xff]
    %v193 = vld [vmem:[#allocation8 + $0x60] sm:$0xff]
    %v194 = vld [vmem:[#allocation8 + $0x68] sm:$0xff]
    %v195 = vld [vmem:[#allocation8 + $0x70] sm:$0xff]
    %v196 = vld [vmem:[#allocation8 + $0x78] sm:$0xff]
    %v197 = vld [vmem:[%s5] sm:$0x1]
    %v199 = vlaneseq
    %v200 = vshrl.u32 %v199, 7
    %v201 = vsub.s32 0, %v200
    %v202 = vrot.slane %v197, %v201
    %204 = vmatprep.subr.mxu0 0.0
    %205 = vmatpush1.msra.mxu0 %v181
    %206 = vmatprep.subr.mxu0 0.0
    %207 = vmatpush1.msra.mxu0 %v182
    %208 = vmatprep.subr.mxu0 0.0
    %209 = vmatpush1.msra.mxu0 %v183
    %210 = vmatprep.subr.mxu0 0.0
    %211 = vmatpush1.msra.mxu0 %v184
    %212 = vmatprep.subr.mxu0 0.0
    %213 = vmatpush1.msra.mxu0 %v185
    %214 = vmatprep.subr.mxu0 0.0
    %215 = vmatpush1.msra.mxu0 %v186
    %216 = vmatprep.subr.mxu0 0.0
    %217 = vmatpush1.msra.mxu0 %v187
    %218 = vmatprep.subr.mxu0 0.0
    %219 = vmatpush1.msra.mxu0 %v188
    %220 = vmatprep.subr.mxu0 0.0
    %221 = vmatpush1.msra.mxu0 %v189
    %222 = vmatprep.subr.mxu0 0.0
    %223 = vmatpush1.msra.mxu0 %v190
    %224 = vmatprep.subr.mxu0 0.0
    %225 = vmatpush1.msra.mxu0 %v191
    %226 = vmatprep.subr.mxu0 0.0
    %227 = vmatpush1.msra.mxu0 %v192
    %228 = vmatprep.subr.mxu0 0.0
    %229 = vmatpush1.msra.mxu0 %v193
    %230 = vmatprep.subr.mxu0 0.0
    %231 = vmatpush1.msra.mxu0 %v194
    %232 = vmatprep.subr.mxu0 0.0
    %233 = vmatpush1.msra.mxu0 %v195
    %234 = vmatprep.subr.mxu0 0.0
    %235 = vmatpush1.msra.mxu0 %v196
    %236 = vmatprep.subr.mxu0 0.0
    %237 = vmatpush1.msra.mxu0 0.0
    %238 = vmatprep.subr.mxu0 0.0
    %239 = vmatpush1.msra.mxu0 0.0
    %240 = vmatprep.subr.mxu0 0.0
    %241 = vmatpush1.msra.mxu0 0.0
    %242 = vmatprep.subr.mxu0 0.0
    %243 = vmatpush1.msra.mxu0 0.0
    %244 = vmatprep.subr.mxu0 0.0
    %245 = vmatpush1.msra.mxu0 0.0
    %246 = vmatprep.subr.mxu0 0.0
    %247 = vmatpush1.msra.mxu0 0.0
    %248 = vmatprep.subr.mxu0 0.0
    %249 = vmatpush1.msra.mxu0 0.0
    %250 = vmatprep.subr.mxu0 0.0
    %251 = vmatpush1.msra.mxu0 0.0
    %252 = vmatprep.subr.mxu0 0.0
    %253 = vmatpush1.msra.mxu0 0.0
    %254 = vmatprep.subr.mxu0 0.0
    %255 = vmatpush1.msra.mxu0 0.0
    %256 = vmatprep.subr.mxu0 0.0
    %257 = vmatpush1.msra.mxu0 0.0
    %258 = vmatprep.subr.mxu0 0.0
    %259 = vmatpush1.msra.mxu0 0.0
    %260 = vmatprep.subr.mxu0 0.0
    %261 = vmatpush1.msra.mxu0 0.0
    %262 = vmatprep.subr.mxu0 0.0
    %263 = vmatpush1.msra.mxu0 0.0
    %264 = vmatprep.subr.mxu0 0.0
    %265 = vmatpush1.msra.mxu0 0.0
    %266 = vmatprep.subr.mxu0 0.0
    %267 = vmatpush1.msra.mxu0 0.0
    %268 = vmatprep.mubr.f32.mxu0 0.0
    %269 = vmatmul.mubr.f32.gmra.mrb[0].mxu0 %v179
    %v270 = vpop.f32.mrb[0].mxu0
    %v271 = vadd.f32 %v202, %v270
    %v272 = vpop.f32.mrb[0].mxu0
    %273 = vmatprep.mubr.f32.mxu0 0.0
    %274 = vmatmul.mubr.f32.gmra.mrb[0].mxu0 %v180
    %v275 = vpop.f32.mrb[0].mxu0
    %v276 = vadd.f32 %v202, %v275
    %v277 = vpop.f32.mrb[0].mxu0
    %278 = vdwg.mxu0
    %v279 = vtanh.pop %v171
    %v280 = vtanh.pop %v176
    %v281 = vtanh.pop %v271
    %v282 = vtanh.pop %v276
    %v283 = vadd.f32 %v279, %v281
    %v284 = vadd.f32 %v280, %v282
    %v285 = vmul.f32 %v283, 0.5
    %v286 = vmul.f32 %v284, 0.5
    %287 = vst [vmem:[#allocation10] sm:$0xff] %v285
    %288 = vst [vmem:[#allocation10 + $0x8] sm:$0xff] %v286
    // Predicated region
    $region42: #{tpu_custom_call.1} parent=1 // pred_check
      _
    $region43: #{tpu_custom_call.1} parent=1 // pred_check_branch
      %290 = sbr.rel (0) target = $region45
    $region44: #{tpu_custom_call.1} parent=1 // pred_region
      %s292 = ssub.s32 256, 256
      %293 = vsyncadd [#allocation4], %s292
      %s294 = sshll.u32 [#allocation10], 4
      %s295 = int_to_ptr.vmem [resolvable:$true] %s294
      %300 = dma.vmem_to_hbm [thread:$0]  %s295, 256, %s6, [#allocation4], 128, 128, 8
    $region45: #{tpu_custom_call.1} parent=1 // pred_fallthru
      _
    // Predicated region
    $region46: #{tpu_custom_call.1} parent=1 // pred_check
      _
    $region47: #{tpu_custom_call.1} parent=1 // pred_check_branch
      %302 = sbr.rel (0) target = $region49
    $region48: #{tpu_custom_call.1} parent=1 // pred_region
      %303 = dma.done [#allocation4], 256
    $region49: #{tpu_custom_call.1} parent=1 // pred_fallthru
      _
    %304 = vsyncpa [#allocation3], 1
    %305 = vsyncpa [#allocation6], 1
    %306 = vsyncpa [#allocation9], 1
    %307 = vsyncpa [#allocation4], 1

</llo_original>
